<compile_context>
chip_gen: v7x
topology: tpu7x:2x2x1
jax: 0.10.0
libtpu: 0.0.40
codegen_flags: <defaults>
</compile_context>

<pallas_src>
import math

import jax
import jax.numpy as jnp
from jax import lax
from jax.experimental import pallas as pl
from jax.experimental.pallas import tpu as pltpu

LANE = 128
ACC_ROWS = 256                         # fixed accumulator height (multiple of 32)
TARGET_BLOCK_BYTES = 4 * 1024 * 1024   # per-input streaming block size
VMEM_LIMIT_BYTES = 32 * 1024 * 1024    # covers 2 inputs x 2 buffers x 4 MiB + acc
SMALL_N_THRESHOLD = 100_000            # below this plain XLA beats a pallas_call


def _make_mse_kernel(tile_rows: int, acc_rows: int, num_steps: int,
                     total_rows: int):
    """Sum of squared differences over a (total_rows, LANE) slab."""
    assert tile_rows % acc_rows == 0
    folds = tile_rows // acc_rows
    last_rows = total_rows - (num_steps - 1) * tile_rows
    needs_mask = last_rows < tile_rows   # trailing partial block -> OOB garbage

    def block_sum(p_ref, g_ref, masked):
        # Chunked squared-difference sum: single accumulator RMW per grid step.
        total = None
        for s in range(folds):
            if folds == 1:
                ps, gs = p_ref[...], g_ref[...]
            else:
                sl = pl.ds(s * acc_rows, acc_rows)
                ps, gs = p_ref[sl, :], g_ref[sl, :]
            d = ps.astype(jnp.float32) - gs.astype(jnp.float32)
            if masked:
                row = lax.broadcasted_iota(jnp.int32, (acc_rows, LANE), 0)
                d = jnp.where(row + s * acc_rows < last_rows, d, 0.0)
            c = d * d
            total = c if total is None else total + c
        return total

    def kernel(p_ref, g_ref, o_ref, acc_ref):
        i = pl.program_id(0)

        @pl.when(i == 0)
        def _init():
            acc_ref[...] = jnp.zeros_like(acc_ref)

        if needs_mask:
            # Only the last (partial) block pays for the iota/compare/select.
            @pl.when(i == num_steps - 1)
            def _last():
                acc_ref[...] += block_sum(p_ref, g_ref, True)

            @pl.when(i != num_steps - 1)
            def _bulk():
                acc_ref[...] += block_sum(p_ref, g_ref, False)
        else:
            acc_ref[...] += block_sum(p_ref, g_ref, False)

        @pl.when(i == num_steps - 1)
        def _finalize():
            o_ref[...] = jnp.broadcast_to(jnp.sum(acc_ref[...]), o_ref.shape)

    return kernel


def _sq_diff_sum_pallas(p2d, g2d, rows: int):
    """Pallas streaming reduction: sum((p - g)^2) over a (rows, 128) slab."""
    p_item = jnp.dtype(p2d.dtype).itemsize
    g_item = jnp.dtype(g2d.dtype).itemsize
    itemsize = max(p_item, g_item)
    target_rows = max(
        ACC_ROWS, (TARGET_BLOCK_BYTES // (LANE * itemsize)) // ACC_ROWS * ACC_ROWS)

    if rows <= ACC_ROWS:
        # Full-dim block (exempt from the (8,128) divisibility rule).
        tile_rows = rows
        acc_rows = rows
    else:
        tile_rows = (min(rows, target_rows) // ACC_ROWS) * ACC_ROWS
        acc_rows = ACC_ROWS
    num_steps = -(-rows // tile_rows)

    kernel = _make_mse_kernel(tile_rows, acc_rows, num_steps, rows)

    bytes_in = rows * LANE * (p_item + g_item)
    cost = pl.CostEstimate(flops=3 * rows * LANE, transcendentals=0,
                           bytes_accessed=bytes_in + 8 * LANE * 4)

    in_spec = pl.BlockSpec((tile_rows, LANE), lambda i: (i, 0))
    partial = pl.pallas_call(
        kernel,
        out_shape=jax.ShapeDtypeStruct((8, LANE), jnp.float32),
        grid_spec=pltpu.PrefetchScalarGridSpec(
            num_scalar_prefetch=0,
            grid=(num_steps,),
            in_specs=[in_spec, in_spec],
            out_specs=pl.BlockSpec((8, LANE), lambda i: (0, 0)),
            scratch_shapes=[pltpu.VMEM((acc_rows, LANE), jnp.float32)],
        ),
        compiler_params=pltpu.CompilerParams(
            dimension_semantics=("arbitrary",),
            vmem_limit_bytes=VMEM_LIMIT_BYTES),
        cost_estimate=cost,
    )(p2d, g2d)
    return partial[0, 0]


def mse_loss_pallas(prediction, spine_heatmap_gt, *, force_pallas: bool = False):
    assert prediction.shape == spine_heatmap_gt.shape, (
        prediction.shape, spine_heatmap_gt.shape)
    n = math.prod(prediction.shape)
    if n == 0:
        return jnp.float32(jnp.nan)  # matches torch.nn.MSELoss on empty input

    if n < SMALL_N_THRESHOLD and not force_pallas:
        d = prediction.astype(jnp.float32) - spine_heatmap_gt.astype(jnp.float32)
        return jnp.mean(d * d)

    flat_p = prediction.reshape(-1)
    flat_g = spine_heatmap_gt.reshape(-1)
    rem = n % LANE
    aligned_n = n - rem

    sq_sum = jnp.float32(0.0)
    if aligned_n > 0:
        rows = aligned_n // LANE
        if rem:
            # TODO(synk): prefix slice may materialize a copy; only taken when
            # numel % 128 != 0 (rare for heatmap shapes).
            p2d = lax.slice(flat_p, (0,), (aligned_n,)).reshape(rows, LANE)
            g2d = lax.slice(flat_g, (0,), (aligned_n,)).reshape(rows, LANE)
        else:
            p2d = flat_p.reshape(rows, LANE)   # zero-copy bitcast
            g2d = flat_g.reshape(rows, LANE)
        sq_sum = _sq_diff_sum_pallas(p2d, g2d, rows)

    if rem:
        tp = lax.slice(flat_p, (aligned_n,), (n,)).astype(jnp.float32)
        tg = lax.slice(flat_g, (aligned_n,), (n,)).astype(jnp.float32)
        sq_sum = sq_sum + jnp.sum((tp - tg) ** 2)

    return sq_sum / jnp.float32(n)


class LossPallas:
    """Mirrors the PyTorch Loss module: MSE(prediction, gt[0]), mean reduction."""

    def __call__(self, prediction, gt):
        spine_heatmap_gt = gt[0]
        return mse_loss_pallas(prediction, spine_heatmap_gt)


if __name__ == "__main__":
    key = jax.random.PRNGKey(0)

    def ref_mse(p, g):
        return jnp.mean((p.astype(jnp.float32) - g.astype(jnp.float32)) ** 2)

    # 1) Canonical small demo through the module (tiny -> fast XLA path).
    k1, k2 = jax.random.split(key)
    pred = jax.random.normal(k1, (2, 4, 16, 16), dtype=jnp.float32)
    heat = jax.random.normal(k2, (2, 4, 16, 16), dtype=jnp.float32)
    gt = (heat,)
    loss_mod = LossPallas()
    loss = jax.block_until_ready(loss_mod(pred, gt))
    assert jnp.allclose(loss, ref_mse(pred, heat), rtol=1e-5, atol=1e-6), loss

    # 2) Same small shape forced through the Pallas kernel (single full-dim block).
    loss_p = jax.block_until_ready(mse_loss_pallas(pred, heat, force_pallas=True))
    assert jnp.allclose(loss_p, ref_mse(pred, heat), rtol=1e-5, atol=1e-6), loss_p

    # 3) numel not a multiple of 128 -> aligned prefix through Pallas + XLA tail.
    k3, k4 = jax.random.split(k1)
    p3 = jax.random.normal(k3, (2, 3, 41, 41), dtype=jnp.float32)   # 10086 elems
    g3 = jax.random.normal(k4, (2, 3, 41, 41), dtype=jnp.float32)
    l3 = jax.block_until_ready(mse_loss_pallas(p3, g3, force_pallas=True))
    assert jnp.allclose(l3, ref_mse(p3, g3), rtol=1e-5, atol=1e-6), l3

    # 4) Multi-step streaming case with a masked trailing partial block:
    #    5*2049*128 = 1,311,360 elems -> rows=10245, tile=8192, steps=2.
    #    Takes the Pallas path automatically (>= threshold).
    k5, k6 = jax.random.split(k2)
    p4 = jax.random.normal(k5, (5, 2049, 128), dtype=jnp.float32)
    g4 = jax.random.normal(k6, (5, 2049, 128), dtype=jnp.float32)
    l4 = jax.block_until_ready(mse_loss_pallas(p4, g4))
    assert jnp.allclose(l4, ref_mse(p4, g4), rtol=1e-4, atol=1e-6), l4

    # 5) bf16 inputs kept in native dtype (in-kernel upcast).
    p5 = pred.astype(jnp.bfloat16)
    g5 = heat.astype(jnp.bfloat16)
    l5 = jax.block_until_ready(mse_loss_pallas(p5, g5, force_pallas=True))
    assert jnp.allclose(l5, ref_mse(p5, g5), rtol=1e-4, atol=1e-5), l5

    # 6) bf16 multi-step path (rows=10245 -> tile=10240, steps=2, tail mask).
    p6 = p4.astype(jnp.bfloat16)
    g6 = g4.astype(jnp.bfloat16)
    l6 = jax.block_until_ready(mse_loss_pallas(p6, g6))
    assert jnp.allclose(l6, ref_mse(p6, g6), rtol=1e-3, atol=1e-4), l6

    print("KERNEL_OK")
</pallas_src>

<mosaic_0001>
module attributes {stable_mosaic.version = 11 : i64} {
  func.func @kernel(%arg0: i32, %arg1: memref<16x128xf32, #tpu.memory_space<vmem>>, %arg2: memref<16x128xf32, #tpu.memory_space<vmem>>, %arg3: memref<8x128xf32, #tpu.memory_space<vmem>>, %arg4: memref<16x128xf32, #tpu.memory_space<vmem>>) attributes {dimension_semantics = [#tpu.dimension_semantics<arbitrary>], iteration_bounds = array<i64: 1>, scalar_prefetch = 0 : i64, scratch_operands = 1 : i64, tpu.core_type = #tpu.core_type<tc>, window_params = [{transform_indices = @transform_0, window_bounds = array<i64: 16, 128>}, {transform_indices = @transform_1, window_bounds = array<i64: 16, 128>}, {pipeline_mode = #tpu.pipeline_mode<synchronous>, transform_indices = @transform_2, window_bounds = array<i64: 8, 128>}]} {
    %c0_i32 = arith.constant 0 : i32
    %0 = arith.cmpi eq, %arg0, %c0_i32 : i32
    %1 = arith.extui %0 : i1 to i32
    %c0_i32_0 = arith.constant 0 : i32
    %2 = arith.cmpi ne, %1, %c0_i32_0 : i32
    scf.if %2 {
      %cst = arith.constant 0.000000e+00 : f32
      %13 = vector.broadcast %cst : f32 to vector<16x128xf32>
      %c0_10 = arith.constant 0 : index
      %c0_11 = arith.constant 0 : index
      %14 = vector.load %arg4[%c0_10, %c0_11] : memref<16x128xf32, #tpu.memory_space<vmem>>, vector<16x128xf32>
      tpu.vector_store %arg4[%c0_10, %c0_11], %13 {strides = array<i32>} : memref<16x128xf32, #tpu.memory_space<vmem>>, vector<16x128xf32>,
    } else {
    }
    %c0 = arith.constant 0 : index
    %c0_1 = arith.constant 0 : index
    %3 = vector.load %arg4[%c0, %c0_1] : memref<16x128xf32, #tpu.memory_space<vmem>>, vector<16x128xf32>
    %c0_2 = arith.constant 0 : index
    %c0_3 = arith.constant 0 : index
    %4 = vector.load %arg1[%c0_2, %c0_3] : memref<16x128xf32, #tpu.memory_space<vmem>>, vector<16x128xf32>
    %c0_4 = arith.constant 0 : index
    %c0_5 = arith.constant 0 : index
    %5 = vector.load %arg2[%c0_4, %c0_5] : memref<16x128xf32, #tpu.memory_space<vmem>>, vector<16x128xf32>
    %6 = arith.subf %4, %5 : vector<16x128xf32>
    %7 = arith.mulf %6, %6 : vector<16x128xf32>
    %8 = arith.addf %3, %7 : vector<16x128xf32>
    %c0_6 = arith.constant 0 : index
    %c0_7 = arith.constant 0 : index
    %9 = vector.load %arg4[%c0_6, %c0_7] : memref<16x128xf32, #tpu.memory_space<vmem>>, vector<16x128xf32>
    tpu.vector_store %arg4[%c0_6, %c0_7], %8 {strides = array<i32>} : memref<16x128xf32, #tpu.memory_space<vmem>>, vector<16x128xf32>,
    %c0_i32_8 = arith.constant 0 : i32
    %10 = arith.cmpi eq, %arg0, %c0_i32_8 : i32
    %11 = arith.extui %10 : i1 to i32
    %c0_i32_9 = arith.constant 0 : i32
    %12 = arith.cmpi ne, %11, %c0_i32_9 : i32
    scf.if %12 {
      %c0_10 = arith.constant 0 : index
      %c0_11 = arith.constant 0 : index
      %13 = vector.load %arg4[%c0_10, %c0_11] : memref<16x128xf32, #tpu.memory_space<vmem>>, vector<16x128xf32>
      %14 = vector.shape_cast %13 : vector<16x128xf32> to vector<1x16x128xf32>
      %cst = arith.constant dense<0.000000e+00> : vector<1xf32>
      %15 = vector.multi_reduction <add>, %14, %cst [1, 2] : vector<1x16x128xf32> to vector<1xf32>
      %16 = vector.shape_cast %15 : vector<1xf32> to vector<1x1x1xf32>
      %17 = vector.extract %16[0, 0, 0] : f32 from vector<1x1x1xf32>
      %18 = vector.broadcast %17 : f32 to vector<8x128xf32>
      %c0_12 = arith.constant 0 : index
      %c0_13 = arith.constant 0 : index
      %19 = vector.load %arg3[%c0_12, %c0_13] : memref<8x128xf32, #tpu.memory_space<vmem>>, vector<8x128xf32>
      tpu.vector_store %arg3[%c0_12, %c0_13], %18 {strides = array<i32>} : memref<8x128xf32, #tpu.memory_space<vmem>>, vector<8x128xf32>,
    } else {
    }
    return
  }
  func.func @transform_0(%arg0: i32) -> (i32, i32) {
    %c0_i32 = arith.constant 0 : i32
    %c0_i32_0 = arith.constant 0 : i32
    return %arg0, %c0_i32 : i32, i32
  }
  func.func @transform_1(%arg0: i32) -> (i32, i32) {
    %c0_i32 = arith.constant 0 : i32
    %c0_i32_0 = arith.constant 0 : i32
    return %arg0, %c0_i32 : i32, i32
  }
  func.func @transform_2(%arg0: i32) -> (i32, i32) {
    %c0_i32 = arith.constant 0 : i32
    %c0_i32_0 = arith.constant 0 : i32
    %c0_i32_1 = arith.constant 0 : i32
    return %c0_i32, %c0_i32_0 : i32, i32
  }
}

</mosaic_0001>

<llo_original>
// kernel: tpu_custom_call.1
$region0: #{tpu_custom_call.1}
  #allocation0 [shape = 'u32[]', space=smem, size = 0x4, offset = 0x4, fixed_abs, tag = 'smem constant byte address 0x4 - core index']
  #allocation1 [shape = 'u32[144,128]{1,0:T(1,128)}', space=vmem, size = 0x12000, scoped, tag = 'internal scratch']
  #allocation2 [shape = 'f32[16,128]{1,0:T(8,128)}', space=vmem, size = 0x2000, scoped, tag = 'scratch operand']
  %s0 = inlined_call_operand.hbm [shape: f32[16,128], index: 0, kind: input, shape index: {}]
  %s1 = inlined_call_operand.hbm [shape: f32[16,128], index: 1, kind: input, shape index: {}]
  %s2 = inlined_call_operand.hbm [shape: f32[8,128], index: 2, kind: output, shape index: {}]
  %s3 = sld [smem:[#allocation0]]
  $region34: #{tpu_custom_call.1} parent=0
    _
  %s5 = ssub.s32 1, %s3
  %s6 = scalar_select 0, %s5, %s3
  $region1: #{tpu_custom_call.1} parent=0
    #allocation3 [shape = 'u8[8192]{0}', space=vmem, size = 0x2000, scoped, tag = 'input window, operand 0, single buffered']
    #allocation4 [shape = 's32[1]{0}', space=sflag, size = 0x4, scoped, tag = 'scoped memory for tpu_custom_call.1']
    #allocation5 [shape = 's32[1]{0}', space=sflag, size = 0x4, scoped, tag = 'scoped memory for tpu_custom_call.1']
    #allocation6 [shape = 'u8[8192]{0}', space=vmem, size = 0x2000, scoped, tag = 'input window, operand 1, single buffered']
    #allocation7 [shape = 's32[1]{0}', space=sflag, size = 0x4, scoped, tag = 'scoped memory for tpu_custom_call.1']
    #allocation8 [shape = 'u8[4096]{0}', space=vmem, size = 0x1000, scoped, tag = 'output window, operand 0, single buffered']
    %7 = vsyncpa [#allocation4], 0
    %8 = vsyncpa [#allocation7], 0
    %9 = vsyncpa [#allocation5], 0
    // Predicated region
    $region2: #{tpu_custom_call.1} parent=1 // pred_check
      _
    $region3: #{tpu_custom_call.1} parent=1 // pred_check_branch
      %11 = sbr.rel (0) target = $region5
    $region4: #{tpu_custom_call.1} parent=1 // pred_region
      %s13 = ssub.s32 256, 256
      %14 = vsyncadd [#allocation4], %s13
      %s15 = sshll.u32 [#allocation3], 4
      %s16 = int_to_ptr.vmem [resolvable:$true] %s15
      %21 = dma.hbm_to_vmem [thread:$0]  %s0, 256, %s16, [#allocation4], 128, 128, 8
    $region5: #{tpu_custom_call.1} parent=1 // pred_fallthru
      _
    // Predicated region
    $region6: #{tpu_custom_call.1} parent=1 // pred_check
      _
    $region7: #{tpu_custom_call.1} parent=1 // pred_check_branch
      %23 = sbr.rel (0) target = $region9
    $region8: #{tpu_custom_call.1} parent=1 // pred_region
      %s25 = ssub.s32 256, 256
      %26 = vsyncadd [#allocation7], %s25
      %s27 = sshll.u32 [#allocation6], 4
      %s28 = int_to_ptr.vmem [resolvable:$true] %s27
      %33 = dma.hbm_to_vmem [thread:$0]  %s1, 256, %s28, [#allocation7], 128, 128, 8
    $region9: #{tpu_custom_call.1} parent=1 // pred_fallthru
      _
    // Predicated region
    $region10: #{tpu_custom_call.1} parent=1 // pred_check
      _
    $region11: #{tpu_custom_call.1} parent=1 // pred_check_branch
      %35 = sbr.rel (0) target = $region13
    $region12: #{tpu_custom_call.1} parent=1 // pred_region
      %36 = dma.done [#allocation4], 256
    $region13: #{tpu_custom_call.1} parent=1 // pred_fallthru
      _
    // Predicated region
    $region14: #{tpu_custom_call.1} parent=1 // pred_check
      _
    $region15: #{tpu_custom_call.1} parent=1 // pred_check_branch
      %38 = sbr.rel (0) target = $region17
    $region16: #{tpu_custom_call.1} parent=1 // pred_region
      %39 = dma.done [#allocation7], 256
    $region17: #{tpu_custom_call.1} parent=1 // pred_fallthru
      _
    %p40 = scmp.eq.s32.totalorder 0, 0
    // Predicated region
    $region18: #{tpu_custom_call.1} parent=1 // pred_check
      %p41 = pneg %p40
    $region19: #{tpu_custom_call.1} parent=1 // pred_check_branch
      %43 = sbr.rel (%p41) target = $region21
    $region20: #{tpu_custom_call.1} parent=1 // pred_region
      %44 = vst [vmem:[#allocation2] sm:$0xff] 0.0
      %45 = vst [vmem:[#allocation2 + $0x8] sm:$0xff] 0.0
    $region21: #{tpu_custom_call.1} parent=1 // pred_fallthru
      _
    %v46 = vld [vmem:[#allocation2] sm:$0xff]
    %v47 = vld [vmem:[#allocation2 + $0x8] sm:$0xff]
    %v48 = vld [vmem:[#allocation3] sm:$0xff]
    %v49 = vld [vmem:[#allocation3 + $0x8] sm:$0xff]
    %v50 = vld [vmem:[#allocation6] sm:$0xff]
    %v51 = vld [vmem:[#allocation6 + $0x8] sm:$0xff]
    %v52 = vsub.f32 %v48, %v50
    %v53 = vsub.f32 %v49, %v51
    %v54 = vmul.f32 %v52, %v52
    %v55 = vmul.f32 %v53, %v53
    %v56 = vadd.f32 %v46, %v54
    %v57 = vadd.f32 %v47, %v55
    %58 = vst [vmem:[#allocation2] sm:$0xff] %v56
    %59 = vst [vmem:[#allocation2 + $0x8] sm:$0xff] %v57
    // Predicated region
    $region22: #{tpu_custom_call.1} parent=1 // pred_check
      %p60 = pneg %p40
    $region23: #{tpu_custom_call.1} parent=1 // pred_check_branch
      %62 = sbr.rel (%p60) target = $region25
    $region24: #{tpu_custom_call.1} parent=1 // pred_region
      %v63 = vld [vmem:[#allocation2] sm:$0xff]
      %v64 = vld [vmem:[#allocation2 + $0x8] sm:$0xff]
      %v65 = vadd.f32 %v63, %v64
      %66 = vadd.xlane.f32.xlu0 %v65
      %v67 = vpop.xlane.xlu0 %66
      %v68 = vrot.slane %v67, 4
      %v69 = vadd.f32 %v67, %v68
      %v70 = vrot.slane %v69, 2
      %v71 = vadd.f32 %v69, %v70
      %v72 = vrot.slane %v71, 1
      %v73 = vadd.f32 %v71, %v72
      %s74 = vtos %v73
      %v75 = vstv %s74
      %76 = vst [vmem:[#allocation8] sm:$0xff] %v75
    $region25: #{tpu_custom_call.1} parent=1 // pred_fallthru
      _
    // Predicated region
    $region26: #{tpu_custom_call.1} parent=1 // pred_check
      _
    $region27: #{tpu_custom_call.1} parent=1 // pred_check_branch
      %78 = sbr.rel (0) target = $region29
    $region28: #{tpu_custom_call.1} parent=1 // pred_region
      %s80 = ssub.s32 128, 128
      %81 = vsyncadd [#allocation5], %s80
      %s83 = sshll.u32 [#allocation8], 4
      %s84 = int_to_ptr.vmem [resolvable:$true] %s83
      %86 = dma.vmem_to_hbm [thread:$0]  %s84, 128, %s2, [#allocation5]
    $region29: #{tpu_custom_call.1} parent=1 // pred_fallthru
      _
    // Predicated region
    $region30: #{tpu_custom_call.1} parent=1 // pred_check
      _
    $region31: #{tpu_custom_call.1} parent=1 // pred_check_branch
      %88 = sbr.rel (0) target = $region33
    $region32: #{tpu_custom_call.1} parent=1 // pred_region
      %89 = dma.done [#allocation5], 128
    $region33: #{tpu_custom_call.1} parent=1 // pred_fallthru
      _
    %90 = vsyncpa [#allocation4], 1
    %91 = vsyncpa [#allocation7], 1
    %92 = vsyncpa [#allocation5], 1

</llo_original>
